<compile_context>
chip_gen: v7x
topology: tpu7x:2x2x1
jax: 0.10.0
libtpu: 0.0.40
codegen_flags: <defaults>
</compile_context>

<pallas_src>
import functools

import jax
import jax.numpy as jnp
from jax.experimental import pallas as pl
from jax.experimental.pallas import tpu as pltpu

# norse LIFParameters defaults
DT = 1e-3
TAU_SYN_INV = 200.0
TAU_MEM_INV = 100.0
V_LEAK = 0.0
V_TH = 1.0
V_RESET = 0.0

HIDDEN = 100       # fc1 / LIF layer width fixed by the module
HIDDEN_PAD = 128   # lane-dense padded hidden size (zero-padded)


def _round_up(n, m):
    return ((n + m - 1) // m) * m


def snn_readout_kernel(w2_ref, b2_ref, out_ref, v_scr, i_scr):
    """Fresh-state LIF single Euler step + fc2 readout for one batch tile.

    w2_ref : (HIDDEN_PAD, C_PAD)  fc2 weight, pre-transposed + zero-padded (resident)
    b2_ref : (1, C_PAD)           fc2 bias, zero-padded (resident)
    out_ref: (TM, C_PAD)          lane-dense logits tile
    v_scr, i_scr : (TM, HIDDEN_PAD) VMEM scratch holding the LIF state
                   (zero-initialised in-kernel -- no HBM round trip).
    """
    # Fresh (state=None) LIF state: generated on-chip, never touches HBM.
    v_scr[...] = jnp.zeros_like(v_scr)
    i_scr[...] = jnp.zeros_like(i_scr)
    v0 = v_scr[...]
    i0 = i_scr[...]

    # norse lif_feed_forward_step, single Euler step (VPU, f32 elementwise).
    v_decayed = v0 + DT * TAU_MEM_INV * ((V_LEAK - v0) + i0)
    # norse heaviside is a strict '> 0' (equality at threshold -> no spike).
    z = (v_decayed - V_TH > 0.0).astype(jnp.float32)

    # fc2 readout (MXU, f32 accumulate).  Zero-padded hidden rows of W2^T and
    # zero-padded spike columns contribute nothing, so the padding is exact.
    out_ref[...] = (
        jnp.dot(z, w2_ref[...], preferred_element_type=jnp.float32) + b2_ref[...]
    )


def prepare_fc2_params(w2, b2):
    """One-time (per weight update) prep: transpose + lane-pad the fc2 params.

    Hoisted out of the hot path per the performance review -- at these sizes the
    transpose/pad ops cost as much as the kernel itself if rebuilt every call.
    """
    C = w2.shape[0]
    c_pad = _round_up(C, 128)  # lane-dense output width
    w2t_pad = jnp.zeros((HIDDEN_PAD, c_pad), jnp.float32).at[:HIDDEN, :C].set(
        w2.astype(jnp.float32).T
    )
    b2_pad = jnp.zeros((1, c_pad), jnp.float32).at[0, :C].set(b2.astype(jnp.float32))
    return w2t_pad, b2_pad


@functools.partial(jax.jit, static_argnames=("num_classes",))
def snn_forward(x, w2t_pad, b2_pad, *, num_classes):
    """Forward pass of SNNetwork (fc1 -> LIFCell single step -> fc2).

    x        : (B, F) float32 -- only its batch dimension is live on this path
               (fc1 feeds the LIF state that the module discards; see header).
    w2t_pad  : (HIDDEN_PAD, C_PAD) from prepare_fc2_params (call once per update)
    b2_pad   : (1, C_PAD)
    Returns (B, num_classes) float32 logits, identical to the PyTorch module.
    """
    B = x.shape[0]
    c_pad = w2t_pad.shape[1]
    assert w2t_pad.shape[0] == HIDDEN_PAD
    assert num_classes <= c_pad

    # Batch tile: multiple of 8, capped at 128 so padding waste stays < 128
    # rows and v7x gets >= 2 grid steps once B > 128 (review opts #4/#5/#7).
    tm = min(128, _round_up(max(B, 1), 8))
    b_pad = _round_up(B, tm)
    nb = b_pad // tm

    # Honest cost of the actual data path (no zero-state DMA, no fc1).
    flops = 2 * b_pad * HIDDEN_PAD * c_pad + 5 * b_pad * HIDDEN_PAD
    bytes_accessed = 4 * (HIDDEN_PAD * c_pad + c_pad + b_pad * c_pad)

    out_pad = pl.pallas_call(
        snn_readout_kernel,
        out_shape=jax.ShapeDtypeStruct((b_pad, c_pad), jnp.float32),
        grid=(nb,),
        in_specs=[
            # Constant-index specs: W2^T / b2 stay resident in VMEM across the
            # grid.  If C ever grows large enough to threaten v7x's 64 MiB
            # VMEM, add pipeline_mode=pl.Buffered(1) here and tile C with a
            # second grid axis; irrelevant at C=16.
            pl.BlockSpec((HIDDEN_PAD, c_pad), lambda b: (0, 0)),   # W2^T (resident)
            pl.BlockSpec((1, c_pad), lambda b: (0, 0)),            # b2   (resident)
        ],
        out_specs=pl.BlockSpec((tm, c_pad), lambda b: (b, 0)),     # lane-dense logits
        scratch_shapes=[
            pltpu.VMEM((tm, HIDDEN_PAD), jnp.float32),  # v (LIF state, on-chip only)
            pltpu.VMEM((tm, HIDDEN_PAD), jnp.float32),  # i (LIF state, on-chip only)
        ],
        compiler_params=pltpu.CompilerParams(
            dimension_semantics=("parallel",),  # v7x: split batch grid over 2 TCs
        ),
        cost_estimate=pl.CostEstimate(
            flops=flops, transcendentals=0, bytes_accessed=bytes_accessed
        ),
    )(w2t_pad, b2_pad)

    # Slice back to the module's (B, C) interface.  (If the consumer tolerates
    # lane-padded logits, return out_pad directly and drop this slice.)
    return out_pad[:B, :num_classes]


def init_linear(key, fan_in, fan_out):
    # Deterministic stand-in for torch.nn.Linear init: U(-1/sqrt(fan_in), +bound)
    kw, kb = jax.random.split(key)
    bound = 1.0 / jnp.sqrt(jnp.float32(fan_in))
    w = jax.random.uniform(kw, (fan_out, fan_in), jnp.float32, -bound, bound)
    b = jax.random.uniform(kb, (fan_out,), jnp.float32, -bound, bound)
    return w, b


def reference_forward(x, w1, b1, w2, b2):
    """Full-path plain-JAX reference (fc1 -> LIF single step from zero -> fc2)."""
    h = x @ w1.T + b1                      # feeds only the discarded state
    v0 = jnp.zeros_like(h)
    i0 = jnp.zeros_like(h)
    v_decayed = v0 + DT * TAU_MEM_INV * ((V_LEAK - v0) + i0)
    z = (v_decayed - V_TH > 0.0).astype(h.dtype)
    return z @ w2.T + b2


if __name__ == "__main__":
    key = jax.random.PRNGKey(0)
    kx, k1, k2 = jax.random.split(key, 3)

    batch = 8
    input_features = 32
    num_classes = 16

    x = jax.random.normal(kx, (batch, input_features), jnp.float32)
    w1, b1 = init_linear(k1, input_features, HIDDEN)   # (100, F), (100,)
    w2, b2 = init_linear(k2, HIDDEN, num_classes)      # (C, 100), (C,)

    # One-time fc2 param prep (hoisted out of the hot path per review).
    w2t_pad, b2_pad = prepare_fc2_params(w2, b2)

    out = snn_forward(x, w2t_pad, b2_pad, num_classes=num_classes)
    out = jax.block_until_ready(out)

    ref = reference_forward(x, w1, b1, w2, b2)
    assert out.shape == (batch, num_classes)
    assert jnp.allclose(out, ref, atol=1e-5, rtol=1e-5)
    print("KERNEL_OK")
</pallas_src>

<mosaic_0001>
module attributes {stable_mosaic.version = 11 : i64} {
  func.func @snn_readout_kernel(%arg0: i32, %arg1: memref<128x128xf32, #tpu.memory_space<vmem>>, %arg2: memref<1x128xf32, #tpu.memory_space<vmem>>, %arg3: memref<8x128xf32, #tpu.memory_space<vmem>>, %arg4: memref<8x128xf32, #tpu.memory_space<vmem>>, %arg5: memref<8x128xf32, #tpu.memory_space<vmem>>) attributes {dimension_semantics = [#tpu.dimension_semantics<parallel>], iteration_bounds = array<i64: 1>, scalar_prefetch = 0 : i64, scratch_operands = 2 : i64, tpu.core_type = #tpu.core_type<tc>, window_params = [{pipeline_mode = #tpu.pipeline_mode<synchronous>, transform_indices = @transform_0, window_bounds = array<i64: 128, 128>}, {pipeline_mode = #tpu.pipeline_mode<synchronous>, transform_indices = @transform_1, window_bounds = array<i64: 1, 128>}, {transform_indices = @transform_2, window_bounds = array<i64: 8, 128>}]} {
    %cst = arith.constant 0.000000e+00 : f32
    %0 = vector.broadcast %cst : f32 to vector<8x128xf32>
    %c0 = arith.constant 0 : index
    %c0_0 = arith.constant 0 : index
    %1 = vector.load %arg4[%c0, %c0_0] : memref<8x128xf32, #tpu.memory_space<vmem>>, vector<8x128xf32>
    tpu.vector_store %arg4[%c0, %c0_0], %0 {strides = array<i32>} : memref<8x128xf32, #tpu.memory_space<vmem>>, vector<8x128xf32>,
    %cst_1 = arith.constant 0.000000e+00 : f32
    %2 = vector.broadcast %cst_1 : f32 to vector<8x128xf32>
    %c0_2 = arith.constant 0 : index
    %c0_3 = arith.constant 0 : index
    %3 = vector.load %arg5[%c0_2, %c0_3] : memref<8x128xf32, #tpu.memory_space<vmem>>, vector<8x128xf32>
    tpu.vector_store %arg5[%c0_2, %c0_3], %2 {strides = array<i32>} : memref<8x128xf32, #tpu.memory_space<vmem>>, vector<8x128xf32>,
    %c0_4 = arith.constant 0 : index
    %c0_5 = arith.constant 0 : index
    %4 = vector.load %arg4[%c0_4, %c0_5] : memref<8x128xf32, #tpu.memory_space<vmem>>, vector<8x128xf32>
    %c0_6 = arith.constant 0 : index
    %c0_7 = arith.constant 0 : index
    %5 = vector.load %arg5[%c0_6, %c0_7] : memref<8x128xf32, #tpu.memory_space<vmem>>, vector<8x128xf32>
    %cst_8 = arith.constant 0.000000e+00 : f32
    %6 = vector.broadcast %cst_8 : f32 to vector<8x128xf32>
    %7 = arith.subf %6, %4 : vector<8x128xf32>
    %8 = arith.addf %7, %5 : vector<8x128xf32>
    %cst_9 = arith.constant 1.000000e-01 : f32
    %9 = vector.broadcast %cst_9 : f32 to vector<8x128xf32>
    %10 = arith.mulf %9, %8 : vector<8x128xf32>
    %11 = arith.addf %4, %10 : vector<8x128xf32>
    %cst_10 = arith.constant 1.000000e+00 : f32
    %12 = vector.broadcast %cst_10 : f32 to vector<8x128xf32>
    %13 = arith.subf %11, %12 : vector<8x128xf32>
    %cst_11 = arith.constant 0.000000e+00 : f32
    %14 = vector.broadcast %cst_11 : f32 to vector<8x128xf32>
    %15 = arith.cmpf ogt, %13, %14 : vector<8x128xf32>
    %16 = arith.extui %15 : vector<8x128xi1> to vector<8x128xi32>
    %17 = arith.sitofp %16 : vector<8x128xi32> to vector<8x128xf32>
    %c0_12 = arith.constant 0 : index
    %c0_13 = arith.constant 0 : index
    %18 = vector.load %arg1[%c0_12, %c0_13] : memref<128x128xf32, #tpu.memory_space<vmem>>, vector<128x128xf32>
    %cst_14 = arith.constant dense<0.000000e+00> : vector<8x128xf32>
    %19 = tpu.matmul %17, %18, %cst_14 {dimension_numbers = #tpu.dot_dimension_numbers<[1], [0], [0], [1], [0, 0, 1, 1], [], []>} : vector<8x128xf32>, vector<128x128xf32>, vector<8x128xf32> -> vector<8x128xf32>
    %c0_15 = arith.constant 0 : index
    %c0_16 = arith.constant 0 : index
    %20 = vector.load %arg2[%c0_15, %c0_16] : memref<1x128xf32, #tpu.memory_space<vmem>>, vector<1x128xf32>
    %21 = vector.broadcast %20 : vector<1x128xf32> to vector<8x128xf32>
    %22 = arith.addf %19, %21 : vector<8x128xf32>
    %c0_17 = arith.constant 0 : index
    %c0_18 = arith.constant 0 : index
    %23 = vector.load %arg3[%c0_17, %c0_18] : memref<8x128xf32, #tpu.memory_space<vmem>>, vector<8x128xf32>
    tpu.vector_store %arg3[%c0_17, %c0_18], %22 {strides = array<i32>} : memref<8x128xf32, #tpu.memory_space<vmem>>, vector<8x128xf32>,
    return
  }
  func.func @transform_0(%arg0: i32) -> (i32, i32) {
    %c0_i32 = arith.constant 0 : i32
    %c0_i32_0 = arith.constant 0 : i32
    %c0_i32_1 = arith.constant 0 : i32
    return %c0_i32, %c0_i32_0 : i32, i32
  }
  func.func @transform_1(%arg0: i32) -> (i32, i32) {
    %c0_i32 = arith.constant 0 : i32
    %c0_i32_0 = arith.constant 0 : i32
    %c0_i32_1 = arith.constant 0 : i32
    return %c0_i32, %c0_i32_0 : i32, i32
  }
  func.func @transform_2(%arg0: i32) -> (i32, i32) {
    %c0_i32 = arith.constant 0 : i32
    %c0_i32_0 = arith.constant 0 : i32
    return %arg0, %c0_i32 : i32, i32
  }
}

</mosaic_0001>

<llo_original>
// kernel: snn_forward.1
$region0: #{snn_forward.1}
  #allocation0 [shape = 'u32[]', space=smem, size = 0x4, offset = 0x4, fixed_abs, tag = 'smem constant byte address 0x4 - core index']
  #allocation1 [shape = 'u32[144,128]{1,0:T(1,128)}', space=vmem, size = 0x12000, scoped, tag = 'internal scratch']
  #allocation2 [shape = 'f32[8,128]{1,0:T(8,128)}', space=vmem, size = 0x1000, scoped, tag = 'scratch operand']
  #allocation3 [shape = 'f32[8,128]{1,0:T(8,128)}', space=vmem, size = 0x1000, scoped, tag = 'scratch operand']
  %s0 = inlined_call_operand.hbm [shape: f32[128,128], index: 0, kind: input, shape index: {}]
  %s1 = inlined_call_operand.vmem [shape: f32[1,128], index: 1, kind: input, shape index: {}]
  %s2 = inlined_call_operand.hbm [shape: f32[8,128], index: 2, kind: output, shape index: {}]
  %s3 = sld [smem:[#allocation0]]
  $region22: #{snn_forward.1} parent=0
    _
  %s5 = ssub.s32 1, %s3
  %s6 = scalar_select 0, %s5, %s3
  $region1: #{snn_forward.1} parent=0
    #allocation4 [shape = 'u8[65536]{0}', space=vmem, size = 0x10000, scoped, tag = 'input window, operand 0, single buffered']
    #allocation5 [shape = 's32[1]{0}', space=sflag, size = 0x4, scoped, tag = 'scoped memory for snn_forward.1']
    #allocation6 [shape = 's32[1]{0}', space=sflag, size = 0x4, scoped, tag = 'scoped memory for snn_forward.1']
    #allocation7 [shape = 'u8[4096]{0}', space=vmem, size = 0x1000, scoped, tag = 'output window, operand 0, single buffered']
    %7 = vsyncpa [#allocation5], 0
    %8 = vsyncpa [#allocation6], 0
    // Predicated region
    $region2: #{snn_forward.1} parent=1 // pred_check
      _
    $region3: #{snn_forward.1} parent=1 // pred_check_branch
      %10 = sbr.rel (0) target = $region5
    $region4: #{snn_forward.1} parent=1 // pred_region
      %s12 = ssub.s32 2048, 2048
      %13 = vsyncadd [#allocation5], %s12
      %s14 = sshll.u32 [#allocation4], 4
      %s15 = int_to_ptr.vmem [resolvable:$true] %s14
      %20 = dma.hbm_to_vmem [thread:$0]  %s0, 2048, %s15, [#allocation5], 128, 128, 8
    $region5: #{snn_forward.1} parent=1 // pred_fallthru
      _
    // Predicated region
    $region6: #{snn_forward.1} parent=1 // pred_check
      _
    $region7: #{snn_forward.1} parent=1 // pred_check_branch
      %22 = sbr.rel (0) target = $region9
    $region8: #{snn_forward.1} parent=1 // pred_region
      _
    $region9: #{snn_forward.1} parent=1 // pred_fallthru
      _
    // Predicated region
    $region10: #{snn_forward.1} parent=1 // pred_check
      _
    $region11: #{snn_forward.1} parent=1 // pred_check_branch
      %24 = sbr.rel (0) target = $region13
    $region12: #{snn_forward.1} parent=1 // pred_region
      %25 = dma.done [#allocation5], 2048
    $region13: #{snn_forward.1} parent=1 // pred_fallthru
      _
    %26 = vst [vmem:[#allocation2] sm:$0xff] 0.0
    %27 = vst [vmem:[#allocation3] sm:$0xff] 0.0
    %v28 = vld [vmem:[#allocation2] sm:$0xff]
    %v29 = vld [vmem:[#allocation3] sm:$0xff]
    %v30 = vsub.f32 0.0, %v28
    %v31 = vadd.f32 %v30, %v29
    %v32 = vmul.f32 %v31, 0.1
    %v33 = vadd.f32 %v28, %v32
    %v34 = vsub.f32 %v33, 1.0
    %vm35 = vcmp.gt.f32.partialorder %v34, 0.0
    %v36 = vsel %vm35, 1, 0
    %v37 = vcvt.s32.f32 %v36
    %v38 = vld [vmem:[#allocation4] sm:$0xff]
    %v39 = vld [vmem:[#allocation4 + $0x8] sm:$0xff]
    %v40 = vld [vmem:[#allocation4 + $0x10] sm:$0xff]
    %v41 = vld [vmem:[#allocation4 + $0x18] sm:$0xff]
    %v42 = vld [vmem:[#allocation4 + $0x20] sm:$0xff]
    %v43 = vld [vmem:[#allocation4 + $0x28] sm:$0xff]
    %v44 = vld [vmem:[#allocation4 + $0x30] sm:$0xff]
    %v45 = vld [vmem:[#allocation4 + $0x38] sm:$0xff]
    %v46 = vld [vmem:[#allocation4 + $0x40] sm:$0xff]
    %v47 = vld [vmem:[#allocation4 + $0x48] sm:$0xff]
    %v48 = vld [vmem:[#allocation4 + $0x50] sm:$0xff]
    %v49 = vld [vmem:[#allocation4 + $0x58] sm:$0xff]
    %v50 = vld [vmem:[#allocation4 + $0x60] sm:$0xff]
    %v51 = vld [vmem:[#allocation4 + $0x68] sm:$0xff]
    %v52 = vld [vmem:[#allocation4 + $0x70] sm:$0xff]
    %v53 = vld [vmem:[#allocation4 + $0x78] sm:$0xff]
    %v54 = vld [vmem:[%s1] sm:$0x1]
    %v56 = vlaneseq
    %v57 = vshrl.u32 %v56, 7
    %v58 = vsub.s32 0, %v57
    %v59 = vrot.slane %v54, %v58
    %61 = vmatprep.subr.mxu0 0.0
    %62 = vmatpush1.msra.mxu0 %v38
    %63 = vmatprep.subr.mxu0 0.0
    %64 = vmatpush1.msra.mxu0 %v39
    %65 = vmatprep.subr.mxu0 0.0
    %66 = vmatpush1.msra.mxu0 %v40
    %67 = vmatprep.subr.mxu0 0.0
    %68 = vmatpush1.msra.mxu0 %v41
    %69 = vmatprep.subr.mxu0 0.0
    %70 = vmatpush1.msra.mxu0 %v42
    %71 = vmatprep.subr.mxu0 0.0
    %72 = vmatpush1.msra.mxu0 %v43
    %73 = vmatprep.subr.mxu0 0.0
    %74 = vmatpush1.msra.mxu0 %v44
    %75 = vmatprep.subr.mxu0 0.0
    %76 = vmatpush1.msra.mxu0 %v45
    %77 = vmatprep.subr.mxu0 0.0
    %78 = vmatpush1.msra.mxu0 %v46
    %79 = vmatprep.subr.mxu0 0.0
    %80 = vmatpush1.msra.mxu0 %v47
    %81 = vmatprep.subr.mxu0 0.0
    %82 = vmatpush1.msra.mxu0 %v48
    %83 = vmatprep.subr.mxu0 0.0
    %84 = vmatpush1.msra.mxu0 %v49
    %85 = vmatprep.subr.mxu0 0.0
    %86 = vmatpush1.msra.mxu0 %v50
    %87 = vmatprep.subr.mxu0 0.0
    %88 = vmatpush1.msra.mxu0 %v51
    %89 = vmatprep.subr.mxu0 0.0
    %90 = vmatpush1.msra.mxu0 %v52
    %91 = vmatprep.subr.mxu0 0.0
    %92 = vmatpush1.msra.mxu0 %v53
    %93 = vmatprep.subr.mxu0 0.0
    %94 = vmatpush1.msra.mxu0 0.0
    %95 = vmatprep.subr.mxu0 0.0
    %96 = vmatpush1.msra.mxu0 0.0
    %97 = vmatprep.subr.mxu0 0.0
    %98 = vmatpush1.msra.mxu0 0.0
    %99 = vmatprep.subr.mxu0 0.0
    %100 = vmatpush1.msra.mxu0 0.0
    %101 = vmatprep.subr.mxu0 0.0
    %102 = vmatpush1.msra.mxu0 0.0
    %103 = vmatprep.subr.mxu0 0.0
    %104 = vmatpush1.msra.mxu0 0.0
    %105 = vmatprep.subr.mxu0 0.0
    %106 = vmatpush1.msra.mxu0 0.0
    %107 = vmatprep.subr.mxu0 0.0
    %108 = vmatpush1.msra.mxu0 0.0
    %109 = vmatprep.subr.mxu0 0.0
    %110 = vmatpush1.msra.mxu0 0.0
    %111 = vmatprep.subr.mxu0 0.0
    %112 = vmatpush1.msra.mxu0 0.0
    %113 = vmatprep.subr.mxu0 0.0
    %114 = vmatpush1.msra.mxu0 0.0
    %115 = vmatprep.subr.mxu0 0.0
    %116 = vmatpush1.msra.mxu0 0.0
    %117 = vmatprep.subr.mxu0 0.0
    %118 = vmatpush1.msra.mxu0 0.0
    %119 = vmatprep.subr.mxu0 0.0
    %120 = vmatpush1.msra.mxu0 0.0
    %121 = vmatprep.subr.mxu0 0.0
    %122 = vmatpush1.msra.mxu0 0.0
    %123 = vmatprep.subr.mxu0 0.0
    %124 = vmatpush1.msra.mxu0 0.0
    %125 = vmatprep.mubr.f32.mxu0 0.0
    %126 = vmatmul.mubr.f32.gmra.mrb[0].mxu0 %v37
    %v127 = vpop.f32.mrb[0].mxu0
    %v128 = vadd.f32 %v59, %v127
    %v129 = vpop.f32.mrb[0].mxu0
    %130 = vdwg.mxu0
    %131 = vst [vmem:[#allocation7] sm:$0xff] %v128
    // Predicated region
    $region14: #{snn_forward.1} parent=1 // pred_check
      _
    $region15: #{snn_forward.1} parent=1 // pred_check_branch
      %133 = sbr.rel (0) target = $region17
    $region16: #{snn_forward.1} parent=1 // pred_region
      %s135 = ssub.s32 128, 128
      %136 = vsyncadd [#allocation6], %s135
      %s138 = sshll.u32 [#allocation7], 4
      %s139 = int_to_ptr.vmem [resolvable:$true] %s138
      %141 = dma.vmem_to_hbm [thread:$0]  %s139, 128, %s2, [#allocation6]
    $region17: #{snn_forward.1} parent=1 // pred_fallthru
      _
    // Predicated region
    $region18: #{snn_forward.1} parent=1 // pred_check
      _
    $region19: #{snn_forward.1} parent=1 // pred_check_branch
      %143 = sbr.rel (0) target = $region21
    $region20: #{snn_forward.1} parent=1 // pred_region
      %144 = dma.done [#allocation6], 128
    $region21: #{snn_forward.1} parent=1 // pred_fallthru
      _
    %145 = vsyncpa [#allocation5], 1
    %146 = vsyncpa [#allocation6], 1

</llo_original>
